<compile_context>
chip_gen: v5e
topology: v5e:2x2
jax: 0.10.0
libtpu: 0.0.40
codegen_flags: <defaults>
</compile_context>

<pallas_src>
import functools

import jax
import jax.numpy as jnp
from jax import lax
from jax.experimental import pallas as pl
from jax.experimental.pallas import tpu as pltpu

# MIA_EPSILON is an external constant in the original codebase; fixed here.
MIA_EPSILON = 1e-6


def _mia_norm_kernel(x_ref, scale_ref, shift_ref, o_ref, *, eps, pack, hidden):
    # x_ref / o_ref: [TR, pack*hidden] lane-dense tiles (pack logical rows per
    # physical 128-lane row when hidden < 128). scale/shift: [1, pack*hidden].
    x = x_ref[...].astype(jnp.float32)
    tr, lane_width = x.shape

    if pack > 1:
        xr = x.reshape(tr, pack, hidden)
        mean = jnp.mean(xr, axis=-1, keepdims=True)
        centered = xr - mean
        # unbiased=False -> population variance (divide by hidden)
        var = jnp.mean(centered * centered, axis=-1, keepdims=True)
        inv_std = lax.rsqrt(var + eps)  # EUP slot, effectively free
        normalized = (centered * inv_std).reshape(tr, lane_width)
    else:
        mean = jnp.mean(x, axis=-1, keepdims=True)
        centered = x - mean
        var = jnp.mean(centered * centered, axis=-1, keepdims=True)
        normalized = centered * lax.rsqrt(var + eps)

    scale = scale_ref[...].astype(jnp.float32)
    shift = shift_ref[...].astype(jnp.float32)
    # Single fused scale*norm+shift, one cast, one store per tile.
    o_ref[...] = (scale * normalized + shift).astype(o_ref.dtype)


def _round_up(n, m):
    return -(-n // m) * m


def _choose_row_tile(packed_rows, lane_width, itemsize,
                     target_tile_bytes=2 * 1024 * 1024, max_rows=2048):
    """Largest row tile (multiple of the sublane packing) under the VMEM target."""
    # sublane packing: 8 rows for 4-byte, 16 for 2-byte, 32 for 1-byte dtypes
    sublane = max(8, 32 // max(1, itemsize))
    by_bytes = max(sublane, target_tile_bytes // max(1, lane_width * itemsize))
    tr = min(max_rows, by_bytes)
    tr = max(sublane, (tr // sublane) * sublane)
    tr = min(tr, _round_up(packed_rows, sublane))
    return tr


def mia_normalization(x, scale, shift, *, eps=MIA_EPSILON):
    """Applies MiaNormalizationLayer.forward to x (normalization over last dim)."""
    orig_shape = x.shape
    hidden = orig_shape[-1]
    assert scale.shape == (hidden,) and shift.shape == (hidden,)

    x2d = x.reshape(-1, hidden)
    rows = x2d.shape[0]
    itemsize = jnp.dtype(x.dtype).itemsize

    # Lane-dense packing: put `pack` logical rows into one 128-lane physical row.
    if hidden < 128 and 128 % hidden == 0:
        pack = 128 // hidden
    else:
        pack = 1
    lane_width = pack * hidden

    packed_rows = -(-rows // pack)
    tr = _choose_row_tile(packed_rows, lane_width, itemsize)
    padded_packed_rows = _round_up(packed_rows, tr)
    padded_rows = padded_packed_rows * pack

    if padded_rows != rows:
        # Zero padding: padded rows normalize to `shift` and are sliced away.
        x2d = jnp.pad(x2d, ((0, padded_rows - rows), (0, 0)))
    x_packed = x2d.reshape(padded_packed_rows, lane_width)  # row-major, metadata only

    scale_row = jnp.tile(scale, pack).reshape(1, lane_width)
    shift_row = jnp.tile(shift, pack).reshape(1, lane_width)

    grid = (padded_packed_rows // tr,)

    # VMEM budget: double-buffered in/out tiles + f32 intermediates + headroom.
    tile_io_bytes = tr * lane_width * itemsize
    tile_f32_bytes = tr * lane_width * 4
    vmem_limit = 4 * tile_io_bytes + 6 * tile_f32_bytes + (2 << 20)
    vmem_limit = int(min(max(vmem_limit, 16 << 20), 48 << 20))  # stays under v7x 64 MiB

    kernel = functools.partial(_mia_norm_kernel, eps=eps, pack=pack, hidden=hidden)

    out_packed = pl.pallas_call(
        kernel,
        out_shape=jax.ShapeDtypeStruct((padded_packed_rows, lane_width), x.dtype),
        grid_spec=pltpu.PrefetchScalarGridSpec(
            num_scalar_prefetch=0,
            grid=grid,
            in_specs=[
                pl.BlockSpec((tr, lane_width), lambda i: (i, 0)),
                pl.BlockSpec((1, lane_width), lambda i: (0, 0)),
                pl.BlockSpec((1, lane_width), lambda i: (0, 0)),
            ],
            out_specs=pl.BlockSpec((tr, lane_width), lambda i: (i, 0)),
        ),
        compiler_params=pltpu.CompilerParams(
            dimension_semantics=("parallel",),  # row tiles shard across TCs (v7x megacore)
            vmem_limit_bytes=vmem_limit,
        ),
    )(x_packed, scale_row, shift_row)

    out2d = out_packed.reshape(padded_rows, hidden)[:rows]
    return out2d.reshape(orig_shape)


def _reference(x, scale, shift, eps=MIA_EPSILON):
    xf = x.astype(jnp.float32)
    mean = jnp.mean(xf, axis=-1, keepdims=True)
    var = jnp.mean((xf - mean) ** 2, axis=-1, keepdims=True)
    normalized = (xf - mean) / jnp.sqrt(var + eps)
    return (scale * normalized + shift).astype(x.dtype)


if __name__ == "__main__":
    key = jax.random.PRNGKey(0)
    batch, seq, hidden = 2, 8, 32  # mia_emb_dim = 32

    k_x, k_s, k_b = jax.random.split(key, 3)
    x = jax.random.normal(k_x, (batch, seq, hidden), dtype=jnp.float32)

    # Parameters (init is ones/zeros in the module; perturb deterministically so
    # the scale/shift application and lane-packing of params are actually tested).
    scale = jnp.ones((hidden,), dtype=jnp.float32) + 0.1 * jax.random.normal(k_s, (hidden,))
    shift = jnp.zeros((hidden,), dtype=jnp.float32) + 0.1 * jax.random.normal(k_b, (hidden,))

    out = mia_normalization(x, scale, shift)
    jax.block_until_ready(out)
    ref = _reference(x, scale, shift)
    assert out.shape == x.shape
    assert jnp.max(jnp.abs(out - ref)) < 1e-5

    # Ragged row count (15 rows, not a multiple of the pack factor) exercises
    # the zero-padding path with identical kernel block shapes.
    x2 = jax.random.normal(jax.random.PRNGKey(1), (3, 5, hidden), dtype=jnp.float32)
    out2 = mia_normalization(x2, scale, shift)
    jax.block_until_ready(out2)
    ref2 = _reference(x2, scale, shift)
    assert out2.shape == x2.shape
    assert jnp.max(jnp.abs(out2 - ref2)) < 1e-5

    print("KERNEL_OK")
</pallas_src>

<mosaic_0001>
module attributes {stable_mosaic.version = 11 : i64} {
  func.func @_mia_norm_kernel(%arg0: i32, %arg1: memref<8x128xf32, #tpu.memory_space<vmem>>, %arg2: memref<1x128xf32, #tpu.memory_space<vmem>>, %arg3: memref<1x128xf32, #tpu.memory_space<vmem>>, %arg4: memref<8x128xf32, #tpu.memory_space<vmem>>) attributes {dimension_semantics = [#tpu.dimension_semantics<parallel>], iteration_bounds = array<i64: 1>, scalar_prefetch = 0 : i64, scratch_operands = 0 : i64, tpu.core_type = #tpu.core_type<tc>, window_params = [{transform_indices = @transform_0, window_bounds = array<i64: 8, 128>}, {pipeline_mode = #tpu.pipeline_mode<synchronous>, transform_indices = @transform_1, window_bounds = array<i64: 1, 128>}, {pipeline_mode = #tpu.pipeline_mode<synchronous>, transform_indices = @transform_2, window_bounds = array<i64: 1, 128>}, {transform_indices = @transform_3, window_bounds = array<i64: 8, 128>}]} {
    %c0 = arith.constant 0 : index
    %c0_0 = arith.constant 0 : index
    %0 = vector.load %arg1[%c0, %c0_0] : memref<8x128xf32, #tpu.memory_space<vmem>>, vector<8x128xf32>
    %1 = vector.shape_cast %0 : vector<8x128xf32> to vector<8x4x32xf32>
    %cst = arith.constant dense<0.000000e+00> : vector<8x4xf32>
    %2 = vector.multi_reduction <add>, %1, %cst [2] : vector<8x4x32xf32> to vector<8x4xf32>
    %3 = vector.shape_cast %2 : vector<8x4xf32> to vector<8x4x1xf32>
    %cst_1 = arith.constant 3.200000e+01 : f32
    %4 = vector.broadcast %cst_1 : f32 to vector<8x4x1xf32>
    %5 = arith.divf %3, %4 : vector<8x4x1xf32>
    %6 = vector.broadcast %5 : vector<8x4x1xf32> to vector<8x4x32xf32>
    %7 = arith.subf %1, %6 : vector<8x4x32xf32>
    %8 = arith.mulf %7, %7 : vector<8x4x32xf32>
    %cst_2 = arith.constant dense<0.000000e+00> : vector<8x4xf32>
    %9 = vector.multi_reduction <add>, %8, %cst_2 [2] : vector<8x4x32xf32> to vector<8x4xf32>
    %10 = vector.shape_cast %9 : vector<8x4xf32> to vector<8x4x1xf32>
    %cst_3 = arith.constant 3.200000e+01 : f32
    %11 = vector.broadcast %cst_3 : f32 to vector<8x4x1xf32>
    %12 = arith.divf %10, %11 : vector<8x4x1xf32>
    %cst_4 = arith.constant 9.99999997E-7 : f32
    %13 = vector.broadcast %cst_4 : f32 to vector<8x4x1xf32>
    %14 = arith.addf %12, %13 : vector<8x4x1xf32>
    %15 = math.rsqrt %14 : vector<8x4x1xf32>
    %16 = vector.broadcast %15 : vector<8x4x1xf32> to vector<8x4x32xf32>
    %17 = arith.mulf %7, %16 : vector<8x4x32xf32>
    %18 = vector.shape_cast %17 : vector<8x4x32xf32> to vector<8x128xf32>
    %c0_5 = arith.constant 0 : index
    %c0_6 = arith.constant 0 : index
    %19 = vector.load %arg2[%c0_5, %c0_6] : memref<1x128xf32, #tpu.memory_space<vmem>>, vector<1x128xf32>
    %c0_7 = arith.constant 0 : index
    %c0_8 = arith.constant 0 : index
    %20 = vector.load %arg3[%c0_7, %c0_8] : memref<1x128xf32, #tpu.memory_space<vmem>>, vector<1x128xf32>
    %21 = vector.broadcast %19 : vector<1x128xf32> to vector<8x128xf32>
    %22 = arith.mulf %21, %18 : vector<8x128xf32>
    %23 = vector.broadcast %20 : vector<1x128xf32> to vector<8x128xf32>
    %24 = arith.addf %22, %23 : vector<8x128xf32>
    %c0_9 = arith.constant 0 : index
    %c0_10 = arith.constant 0 : index
    %25 = vector.load %arg4[%c0_9, %c0_10] : memref<8x128xf32, #tpu.memory_space<vmem>>, vector<8x128xf32>
    tpu.vector_store %arg4[%c0_9, %c0_10], %24 {strides = array<i32>} : memref<8x128xf32, #tpu.memory_space<vmem>>, vector<8x128xf32>,
    return
  }
  func.func @transform_0(%arg0: i32) -> (i32, i32) {
    %c0_i32 = arith.constant 0 : i32
    %c0_i32_0 = arith.constant 0 : i32
    return %arg0, %c0_i32 : i32, i32
  }
  func.func @transform_1(%arg0: i32) -> (i32, i32) {
    %c0_i32 = arith.constant 0 : i32
    %c0_i32_0 = arith.constant 0 : i32
    %c0_i32_1 = arith.constant 0 : i32
    return %c0_i32, %c0_i32_0 : i32, i32
  }
  func.func @transform_2(%arg0: i32) -> (i32, i32) {
    %c0_i32 = arith.constant 0 : i32
    %c0_i32_0 = arith.constant 0 : i32
    %c0_i32_1 = arith.constant 0 : i32
    return %c0_i32, %c0_i32_0 : i32, i32
  }
  func.func @transform_3(%arg0: i32) -> (i32, i32) {
    %c0_i32 = arith.constant 0 : i32
    %c0_i32_0 = arith.constant 0 : i32
    return %arg0, %c0_i32 : i32, i32
  }
}

</mosaic_0001>

<llo_original>
// kernel: tpu_custom_call.1
$region0: #{tpu_custom_call.1}
  #allocation0 [shape = 'u32[]', space=smem, size = 0x4, offset = 0x4, fixed_abs, tag = 'smem constant byte address 0x4 - core index']
  #allocation1 [shape = 'u32[72,128]{1,0:T(1,128)}', space=vmem, size = 0x9000, scoped, tag = 'internal scratch']
  %s0 = inlined_call_operand.hbm [shape: f32[8,128], index: 0, kind: input, shape index: {}]
  %s1 = inlined_call_operand.hbm [shape: f32[1,128], index: 1, kind: input, shape index: {}]
  %s2 = inlined_call_operand.vmem [shape: f32[1,128], index: 2, kind: input, shape index: {}]
  %s3 = inlined_call_operand.hbm [shape: f32[8,128], index: 3, kind: output, shape index: {}]
  %s4 = sld [smem:[#allocation0]]
  $region30: #{tpu_custom_call.1} parent=0
    _
  %s6 = ssub.s32 1, %s4
  %s7 = scalar_select 0, %s6, %s4
  $region1: #{tpu_custom_call.1} parent=0
    #allocation2 [shape = 'u8[4096]{0}', space=vmem, size = 0x1000, scoped, tag = 'input window, operand 0, single buffered']
    #allocation3 [shape = 's32[1]{0}', space=sflag, size = 0x4, scoped, tag = 'scoped memory for tpu_custom_call.1']
    #allocation4 [shape = 's32[1]{0}', space=sflag, size = 0x4, scoped, tag = 'scoped memory for tpu_custom_call.1']
    #allocation5 [shape = 'u8[512]{0}', space=vmem, size = 0x400, scoped, tag = 'input window, operand 1, single buffered']
    #allocation6 [shape = 's32[1]{0}', space=sflag, size = 0x4, scoped, tag = 'scoped memory for tpu_custom_call.1']
    #allocation7 [shape = 'u8[4096]{0}', space=vmem, size = 0x1000, scoped, tag = 'output window, operand 0, single buffered']
    %8 = vsyncpa [#allocation3], 0
    %9 = vsyncpa [#allocation6], 0
    %10 = vsyncpa [#allocation4], 0
    // Predicated region
    $region2: #{tpu_custom_call.1} parent=1 // pred_check
      _
    $region3: #{tpu_custom_call.1} parent=1 // pred_check_branch
      %12 = sbr.rel (0) target = $region5
    $region4: #{tpu_custom_call.1} parent=1 // pred_region
      %14 = vsyncadd [#allocation3], 0
      %s16 = sshll.u32 %s0, 4
      %s17 = int_to_ptr.hbm [resolvable:$true] %s16
      %s18 = sshll.u32 [#allocation2], 4
      %s19 = int_to_ptr.vmem [resolvable:$true] %s18
      %21 = dma.hbm_to_vmem [thread:$0]  %s17, 128, %s19, [#allocation3]
    $region5: #{tpu_custom_call.1} parent=1 // pred_fallthru
      _
    // Predicated region
    $region6: #{tpu_custom_call.1} parent=1 // pred_check
      _
    $region7: #{tpu_custom_call.1} parent=1 // pred_check_branch
      %23 = sbr.rel (0) target = $region9
    $region8: #{tpu_custom_call.1} parent=1 // pred_region
      %25 = vsyncadd [#allocation6], 0
      %s27 = sshll.u32 %s1, 4
      %s28 = int_to_ptr.hbm [resolvable:$true] %s27
      %s29 = sshll.u32 [#allocation5], 4
      %s30 = int_to_ptr.vmem [resolvable:$true] %s29
      %32 = dma.hbm_to_vmem [thread:$0]  %s28, 16, %s30, [#allocation6]
    $region9: #{tpu_custom_call.1} parent=1 // pred_fallthru
      _
    // Predicated region
    $region10: #{tpu_custom_call.1} parent=1 // pred_check
      _
    $region11: #{tpu_custom_call.1} parent=1 // pred_check_branch
      %34 = sbr.rel (0) target = $region13
    $region12: #{tpu_custom_call.1} parent=1 // pred_region
      _
    $region13: #{tpu_custom_call.1} parent=1 // pred_fallthru
      _
    // Predicated region
    $region14: #{tpu_custom_call.1} parent=1 // pred_check
      _
    $region15: #{tpu_custom_call.1} parent=1 // pred_check_branch
      %36 = sbr.rel (0) target = $region17
    $region16: #{tpu_custom_call.1} parent=1 // pred_region
      %38 = dma.done [#allocation3], 128
    $region17: #{tpu_custom_call.1} parent=1 // pred_fallthru
      _
    // Predicated region
    $region18: #{tpu_custom_call.1} parent=1 // pred_check
      _
    $region19: #{tpu_custom_call.1} parent=1 // pred_check_branch
      %40 = sbr.rel (0) target = $region21
    $region20: #{tpu_custom_call.1} parent=1 // pred_region
      %42 = dma.done [#allocation6], 16
    $region21: #{tpu_custom_call.1} parent=1 // pred_fallthru
      _
    %v43 = vld [vmem:[#allocation2] sm:$0xff]
    %45 = vrot.lane.b32.xlu0 %v43, 96
    %v46 = vpop.permute.xlu0 %45
    %48 = vrot.lane.b32.xlu0 %v43, 64
    %v49 = vpop.permute.xlu0 %48
    %51 = vrot.lane.b32.xlu0 %v43, 32
    %v52 = vpop.permute.xlu0 %51
    %v54 = vrot.slane %v49, 4
    %vm55 = vcmask 1047556
    %v56 = vsel %vm55, %v54, %v43
    %v57 = vrot.slane %v43, 4
    %v58 = vsel %vm55, %v49, %v57
    %v60 = vunpack.c.l.s4 1983009808
    %v61 = vunpack.c.0.s8 %v60
    %v62 = vperm.slane %v56, %v61
    %v64 = vunpack.c.l.s4 1983009808
    %v65 = vunpack.c.0.s8 %v64
    %v66 = vperm.slane %v58, %v65
    %v67 = vrot.slane %v52, 4
    %v68 = vsel %vm55, %v67, %v46
    %v69 = vrot.slane %v46, 4
    %v70 = vsel %vm55, %v52, %v69
    %v72 = vunpack.c.l.s4 1983009808
    %v73 = vunpack.c.0.s8 %v72
    %v74 = vperm.slane %v68, %v73
    %v76 = vunpack.c.l.s4 1983009808
    %v77 = vunpack.c.0.s8 %v76
    %v78 = vperm.slane %v70, %v77
    %v79 = vrot.slane %v74, 4
    %v80 = vsel %vm55, %v79, %v62
    %v81 = vrot.slane %v62, 4
    %v82 = vsel %vm55, %v74, %v81
    %v84 = vunpack.c.l.s4 1934713408
    %v85 = vunpack.c.0.s8 %v84
    %v86 = vperm.slane %v80, %v85
    %v88 = vunpack.c.l.s4 1934713408
    %v89 = vunpack.c.0.s8 %v88
    %v90 = vperm.slane %v82, %v89
    %v91 = vrot.slane %v78, 4
    %v92 = vsel %vm55, %v91, %v66
    %v93 = vrot.slane %v66, 4
    %v94 = vsel %vm55, %v78, %v93
    %v96 = vunpack.c.l.s4 1934713408
    %v97 = vunpack.c.0.s8 %v96
    %v98 = vperm.slane %v92, %v97
    %v100 = vunpack.c.l.s4 1934713408
    %v101 = vunpack.c.0.s8 %v100
    %v102 = vperm.slane %v94, %v101
    %v103 = vrot.slane %v86, 4
    %v104 = vsel %vm55, 0.0, %v103
    %v105 = vrot.slane %v90, 4
    %v106 = vsel %vm55, 0.0, %v105
    %v107 = vrot.slane %v98, 4
    %v108 = vsel %vm55, 0.0, %v107
    %v109 = vrot.slane %v102, 4
    %v110 = vsel %vm55, 0.0, %v109
    %vm111 = vcmask 257024
    %v112 = vsel %vm111, %v86, 0.0
    %113 = vadd.xlane.f32.xlu0 %v112
    %v114 = vpop.xlane.xlu0 %113
    %v115 = vsel %vm111, %v104, 0.0
    %116 = vadd.xlane.f32.xlu0 %v115
    %v117 = vpop.xlane.xlu0 %116
    %v118 = vsel %vm111, %v90, 0.0
    %119 = vadd.xlane.f32.xlu0 %v118
    %v120 = vpop.xlane.xlu0 %119
    %v121 = vsel %vm111, %v106, 0.0
    %122 = vadd.xlane.f32.xlu0 %v121
    %v123 = vpop.xlane.xlu0 %122
    %v124 = vsel %vm111, %v98, 0.0
    %125 = vadd.xlane.f32.xlu0 %v124
    %v126 = vpop.xlane.xlu0 %125
    %v127 = vsel %vm111, %v108, 0.0
    %128 = vadd.xlane.f32.xlu0 %v127
    %v129 = vpop.xlane.xlu0 %128
    %v130 = vsel %vm111, %v102, 0.0
    %131 = vadd.xlane.f32.xlu0 %v130
    %v132 = vpop.xlane.xlu0 %131
    %v133 = vsel %vm111, %v110, 0.0
    %134 = vadd.xlane.f32.xlu0 %v133
    %v135 = vpop.xlane.xlu0 %134
    %v136 = vrcp.pop 32.0
    %v137 = vmul.f32 32.0, %v136
    %v138 = vsub.f32 1.0, %v137
    %v139 = vmul.f32 %v136, %v138
    %v140 = vadd.f32 %v136, %v139
    %vm141 = vweird.f32 %v136
    %v142 = vsel %vm141, %v136, %v140
    %v143 = vmul.f32 %v114, %v142
    %v144 = vmul.f32 %v117, %v142
    %v145 = vmul.f32 %v120, %v142
    %v146 = vmul.f32 %v123, %v142
    %v147 = vmul.f32 %v126, %v142
    %v148 = vmul.f32 %v129, %v142
    %v149 = vmul.f32 %v132, %v142
    %v150 = vmul.f32 %v135, %v142
    %v151 = vsub.f32 %v86, %v143
    %v152 = vsub.f32 %v104, %v144
    %v153 = vsub.f32 %v90, %v145
    %v154 = vsub.f32 %v106, %v146
    %v155 = vsub.f32 %v98, %v147
    %v156 = vsub.f32 %v108, %v148
    %v157 = vsub.f32 %v102, %v149
    %v158 = vsub.f32 %v110, %v150
    %v159 = vmul.f32 %v151, %v151
    %v160 = vmul.f32 %v152, %v152
    %v161 = vmul.f32 %v153, %v153
    %v162 = vmul.f32 %v154, %v154
    %v163 = vmul.f32 %v155, %v155
    %v164 = vmul.f32 %v156, %v156
    %v165 = vmul.f32 %v157, %v157
    %v166 = vmul.f32 %v158, %v158
    %v167 = vsel %vm111, %v159, 0.0
    %168 = vadd.xlane.f32.xlu0 %v167
    %v169 = vpop.xlane.xlu0 %168
    %v170 = vsel %vm111, %v160, 0.0
    %171 = vadd.xlane.f32.xlu0 %v170
    %v172 = vpop.xlane.xlu0 %171
    %v173 = vsel %vm111, %v161, 0.0
    %174 = vadd.xlane.f32.xlu0 %v173
    %v175 = vpop.xlane.xlu0 %174
    %v176 = vsel %vm111, %v162, 0.0
    %177 = vadd.xlane.f32.xlu0 %v176
    %v178 = vpop.xlane.xlu0 %177
    %v179 = vsel %vm111, %v163, 0.0
    %180 = vadd.xlane.f32.xlu0 %v179
    %v181 = vpop.xlane.xlu0 %180
    %v182 = vsel %vm111, %v164, 0.0
    %183 = vadd.xlane.f32.xlu0 %v182
    %v184 = vpop.xlane.xlu0 %183
    %v185 = vsel %vm111, %v165, 0.0
    %186 = vadd.xlane.f32.xlu0 %v185
    %v187 = vpop.xlane.xlu0 %186
    %v188 = vsel %vm111, %v166, 0.0
    %189 = vadd.xlane.f32.xlu0 %v188
    %v190 = vpop.xlane.xlu0 %189
    %v191 = vmul.f32 %v169, %v142
    %v192 = vmul.f32 %v172, %v142
    %v193 = vmul.f32 %v175, %v142
    %v194 = vmul.f32 %v178, %v142
    %v195 = vmul.f32 %v181, %v142
    %v196 = vmul.f32 %v184, %v142
    %v197 = vmul.f32 %v187, %v142
    %v198 = vmul.f32 %v190, %v142
    %v199 = vadd.f32 %v191, 1e-06
    %v200 = vadd.f32 %v192, 1e-06
    %v201 = vadd.f32 %v193, 1e-06
    %v202 = vadd.f32 %v194, 1e-06
    %v203 = vadd.f32 %v195, 1e-06
    %v204 = vadd.f32 %v196, 1e-06
    %v205 = vadd.f32 %v197, 1e-06
    %v206 = vadd.f32 %v198, 1e-06
    %v207 = vrsqrt.pop %v199
    %v208 = vmul.f32 %v207, %v199
    %v209 = vmul.f32 %v208, %v207
    %v210 = vmul.f32 0.5, %v209
    %v211 = vsub.f32 1.5, %v210
    %v212 = vmul.f32 %v207, %v211
    %vm213 = vweird.f32 %v199
    %vm214 = vweird.f32 %v207
    %vm215 = vmor %vm213, %vm214
    %v216 = vsel %vm215, %v207, %v212
    %v217 = vrsqrt.pop %v200
    %v218 = vmul.f32 %v217, %v200
    %v219 = vmul.f32 %v218, %v217
    %v220 = vmul.f32 0.5, %v219
    %v221 = vsub.f32 1.5, %v220
    %v222 = vmul.f32 %v217, %v221
    %vm223 = vweird.f32 %v200
    %vm224 = vweird.f32 %v217
    %vm225 = vmor %vm223, %vm224
    %v226 = vsel %vm225, %v217, %v222
    %v227 = vrsqrt.pop %v201
    %v228 = vmul.f32 %v227, %v201
    %v229 = vmul.f32 %v228, %v227
    %v230 = vmul.f32 0.5, %v229
    %v231 = vsub.f32 1.5, %v230
    %v232 = vmul.f32 %v227, %v231
    %vm233 = vweird.f32 %v201
    %vm234 = vweird.f32 %v227
    %vm235 = vmor %vm233, %vm234
    %v236 = vsel %vm235, %v227, %v232
    %v237 = vrsqrt.pop %v202
    %v238 = vmul.f32 %v237, %v202
    %v239 = vmul.f32 %v238, %v237
    %v240 = vmul.f32 0.5, %v239
    %v241 = vsub.f32 1.5, %v240
    %v242 = vmul.f32 %v237, %v241
    %vm243 = vweird.f32 %v202
    %vm244 = vweird.f32 %v237
    %vm245 = vmor %vm243, %vm244
    %v246 = vsel %vm245, %v237, %v242
    %v247 = vrsqrt.pop %v203
    %v248 = vmul.f32 %v247, %v203
    %v249 = vmul.f32 %v248, %v247
    %v250 = vmul.f32 0.5, %v249
    %v251 = vsub.f32 1.5, %v250
    %v252 = vmul.f32 %v247, %v251
    %vm253 = vweird.f32 %v203
    %vm254 = vweird.f32 %v247
    %vm255 = vmor %vm253, %vm254
    %v256 = vsel %vm255, %v247, %v252
    %v257 = vrsqrt.pop %v204
    %v258 = vmul.f32 %v257, %v204
    %v259 = vmul.f32 %v258, %v257
    %v260 = vmul.f32 0.5, %v259
    %v261 = vsub.f32 1.5, %v260
    %v262 = vmul.f32 %v257, %v261
    %vm263 = vweird.f32 %v204
    %vm264 = vweird.f32 %v257
    %vm265 = vmor %vm263, %vm264
    %v266 = vsel %vm265, %v257, %v262
    %v267 = vrsqrt.pop %v205
    %v268 = vmul.f32 %v267, %v205
    %v269 = vmul.f32 %v268, %v267
    %v270 = vmul.f32 0.5, %v269
    %v271 = vsub.f32 1.5, %v270
    %v272 = vmul.f32 %v267, %v271
    %vm273 = vweird.f32 %v205
    %vm274 = vweird.f32 %v267
    %vm275 = vmor %vm273, %vm274
    %v276 = vsel %vm275, %v267, %v272
    %v277 = vrsqrt.pop %v206
    %v278 = vmul.f32 %v277, %v206
    %v279 = vmul.f32 %v278, %v277
    %v280 = vmul.f32 0.5, %v279
    %v281 = vsub.f32 1.5, %v280
    %v282 = vmul.f32 %v277, %v281
    %vm283 = vweird.f32 %v206
    %vm284 = vweird.f32 %v277
    %vm285 = vmor %vm283, %vm284
    %v286 = vsel %vm285, %v277, %v282
    %v287 = vmul.f32 %v151, %v216
    %v288 = vmul.f32 %v152, %v226
    %v289 = vmul.f32 %v153, %v236
    %v290 = vmul.f32 %v154, %v246
    %v291 = vmul.f32 %v155, %v256
    %v292 = vmul.f32 %v156, %v266
    %v293 = vmul.f32 %v157, %v276
    %v294 = vmul.f32 %v158, %v286
    %v295 = vrot.slane %v289, 4
    %v296 = vsel %vm55, %v295, %v287
    %v298 = vunpack.c.l.s4 1983009808
    %v299 = vunpack.c.0.s8 %v298
    %v300 = vperm.slane %v296, %v299
    %v301 = vrot.slane %v290, 4
    %v302 = vsel %vm55, %v301, %v288
    %v304 = vunpack.c.l.s4 1983009808
    %v305 = vunpack.c.0.s8 %v304
    %v306 = vperm.slane %v302, %v305
    %v307 = vrot.slane %v293, 4
    %v308 = vsel %vm55, %v307, %v291
    %v310 = vunpack.c.l.s4 1983009808
    %v311 = vunpack.c.0.s8 %v310
    %v312 = vperm.slane %v308, %v311
    %v313 = vrot.slane %v294, 4
    %v314 = vsel %vm55, %v313, %v292
    %v316 = vunpack.c.l.s4 1983009808
    %v317 = vunpack.c.0.s8 %v316
    %v318 = vperm.slane %v314, %v317
    %v319 = vrot.slane %v306, 4
    %v320 = vsel %vm55, %v319, %v300
    %v321 = vrot.slane %v300, 4
    %v322 = vsel %vm55, %v306, %v321
    %v324 = vunpack.c.l.s4 1934713408
    %v325 = vunpack.c.0.s8 %v324
    %v326 = vperm.slane %v320, %v325
    %v328 = vunpack.c.l.s4 1934713408
    %v329 = vunpack.c.0.s8 %v328
    %v330 = vperm.slane %v322, %v329
    %v331 = vrot.slane %v318, 4
    %v332 = vsel %vm55, %v331, %v312
    %v333 = vrot.slane %v312, 4
    %v334 = vsel %vm55, %v318, %v333
    %v336 = vunpack.c.l.s4 1934713408
    %v337 = vunpack.c.0.s8 %v336
    %v338 = vperm.slane %v332, %v337
    %v340 = vunpack.c.l.s4 1934713408
    %v341 = vunpack.c.0.s8 %v340
    %v342 = vperm.slane %v334, %v341
    %v343 = vrot.slane %v338, 4
    %v344 = vsel %vm55, %v343, %v326
    %v345 = vrot.slane %v326, 4
    %v346 = vsel %vm55, %v338, %v345
    %v347 = vrot.slane %v342, 4
    %v348 = vsel %vm55, %v347, %v330
    %v349 = vrot.slane %v330, 4
    %v350 = vsel %vm55, %v342, %v349
    %352 = vrot.lane.b32.xlu0 %v346, 32
    %v353 = vpop.permute.xlu0 %352
    %356 = vrot.lane.b32.xlu0 %v348, 64
    %v357 = vpop.permute.xlu0 %356
    %360 = vrot.lane.b32.xlu0 %v350, 96
    %v361 = vpop.permute.xlu0 %360
    %vm363 = vcmask 261120
    %v364 = vsel %vm363, %v344, %v353
    %vm365 = vcmask 523264
    %v366 = vsel %vm365, %v364, %v357
    %vm367 = vcmask 785408
    %v368 = vsel %vm367, %v366, %v361
    %v369 = vld [vmem:[#allocation5] sm:$0x1]
    %v370 = vld [vmem:[%s2] sm:$0x1]
    %v372 = vperm.slane %v369, 0
    %v374 = vmul.f32 %v372, %v368
    %v376 = vperm.slane %v370, 0
    %v378 = vadd.f32 %v374, %v376
    %379 = vst [vmem:[#allocation7] sm:$0xff] %v378
    // Predicated region
    $region22: #{tpu_custom_call.1} parent=1 // pred_check
      _
    $region23: #{tpu_custom_call.1} parent=1 // pred_check_branch
      %381 = sbr.rel (0) target = $region25
    $region24: #{tpu_custom_call.1} parent=1 // pred_region
      %383 = vsyncadd [#allocation4], 0
      %s385 = sshll.u32 [#allocation7], 4
      %s386 = int_to_ptr.vmem [resolvable:$true] %s385
      %s387 = sshll.u32 %s3, 4
      %s388 = int_to_ptr.hbm [resolvable:$true] %s387
      %390 = dma.vmem_to_hbm [thread:$0]  %s386, 128, %s388, [#allocation4]
    $region25: #{tpu_custom_call.1} parent=1 // pred_fallthru
      _
    // Predicated region
    $region26: #{tpu_custom_call.1} parent=1 // pred_check
      _
    $region27: #{tpu_custom_call.1} parent=1 // pred_check_branch
      %392 = sbr.rel (0) target = $region29
    $region28: #{tpu_custom_call.1} parent=1 // pred_region
      %394 = dma.done [#allocation4], 128
    $region29: #{tpu_custom_call.1} parent=1 // pred_fallthru
      _
    %395 = vsyncpa [#allocation3], 1
    %396 = vsyncpa [#allocation6], 1
    %397 = vsyncpa [#allocation4], 1

</llo_original>
